<compile_context>
chip_gen: v5e
topology: v5e:2x2
jax: 0.10.0
libtpu: 0.0.40
codegen_flags: <defaults>
</compile_context>

<pallas_src>
import math

import jax
import jax.numpy as jnp
import numpy as np
from jax.experimental import pallas as pl
from jax.experimental.pallas import tpu as pltpu

C = 32          # multiplicity of node-feature irreps
D_NODE = 4 * C  # C scalars + 3*C vector components (e3nn flat layout)
D_FIELD = 4     # 1x0e + 1x1o


def _round_up(n, m):
    return ((n + m - 1) // m) * m


# --------------------------------------------------------------------------
# Kernel
# --------------------------------------------------------------------------
def _field_block_kernel(x_ref, f_ref, sel_ref, w_pq_ref, w_yz_ref, o_ref):
    x = x_ref[...]                       # (TN, 4C) node feats, native e3nn layout
    f = f_ref[...]                       # (TN, 4)  field: [q, Ex, Ey, Ez]
    sel = sel_ref[...]                   # (2, 4C)  int32 lane selectors
    fsel = sel[0:1, :]                   # m-index per input lane of the q path
    osel = sel[1:2, :]                   # 1 where Ey multiplies t, else Ez

    f0 = f[:, 0:1]
    ex = f[:, 1:2]
    ey = f[:, 2:3]
    ez = f[:, 3:4]

    # Per-lane field pattern aligned with x's native (u,m)-fastest layout:
    #   lanes < C       -> Ex    (feeds out_x via A1)
    #   lane C + 3u + m -> f1[m] (feeds out_s via B0)
    fq = jnp.where(fsel == 0, ex, jnp.where(fsel == 1, ey, ez))   # (TN, 4C)

    p = f0 * x                           # f0 * [x0 | x1m]   -> A0 / B1 paths
    q = fq * x                           # [Ex*x0 | f1m*x1m] -> A1(x) / B0 paths
    pq = jnp.concatenate([p, q], axis=-1).astype(jnp.bfloat16)    # (TN, 8C)

    # One K=256 MXU dot for the p/q paths, one K=32 dot for the Ey/Ez paths.
    o = jnp.dot(pq, w_pq_ref[...], preferred_element_type=jnp.float32)
    t = jnp.dot(x[:, :C].astype(jnp.bfloat16), w_yz_ref[...],
                preferred_element_type=jnp.float32)     # cols 4c+2 / 4c+3 only
    o = o + jnp.where(osel == 1, ey, ez) * t

    # Lane-dense, (u,m)-interleaved output: column 4c+k, k=0 scalar, k=1..3 = 1o
    o_ref[...] = o


# --------------------------------------------------------------------------
# Host-side weight fusion (numpy, one-time; exact in f32 then cast to bf16)
# --------------------------------------------------------------------------
def build_fused_weights(params):
    w0u = np.asarray(params["w0_up"], np.float32)   # (C, C)  linear_up 0e
    w1u = np.asarray(params["w1_up"], np.float32)   # (C, C)  linear_up 1o
    wtp = np.asarray(params["w_tp"], np.float32)    # (4, C)  TP path weights
    wl0 = np.asarray(params["wl0"], np.float32)     # (2C, C) final linear 0e
    wl1 = np.asarray(params["wl1"], np.float32)     # (2C, C) final linear 1o

    s = 1.0 / (math.sqrt(C) * math.sqrt(2 * C))
    a0 = (w0u @ (wtp[0][:, None] * wl0[:C])) * s                      # 0e x 0e -> 0e
    b0 = (w1u @ (wtp[1][:, None] * wl0[C:])) * (s / math.sqrt(3.0))   # 1o x 1o -> 0e
    a1 = (w0u @ (wtp[2][:, None] * wl1[:C])) * s                      # 0e x 1o -> 1o
    b1 = (w1u @ (wtp[3][:, None] * wl1[C:])) * s                      # 1o x 0e -> 1o

    # Weight rows follow x's native lane order (l<C: scalar u, l=C+3u+m: 1o),
    # columns follow the interleaved output layout (col 4c+k).
    wp = np.zeros((D_NODE, C, 4), np.float32)
    wq = np.zeros((D_NODE, C, 4), np.float32)
    wp[:C, :, 0] = a0                    # f0*x0      -> out_s
    wq[:C, :, 1] = a1                    # Ex*x0      -> out_x
    for m in range(3):
        wp[C + m::3, :, 1 + m] = b1      # f0*x1m     -> out_m
        wq[C + m::3, :, 0] = b0          # f1m*x1m    -> out_s
    wyz = np.zeros((C, C, 4), np.float32)
    wyz[:, :, 2] = a1                    # x0@A1 * Ey -> out_y
    wyz[:, :, 3] = a1                    # x0@A1 * Ez -> out_z

    w_pq = np.concatenate([wp.reshape(D_NODE, D_NODE),
                           wq.reshape(D_NODE, D_NODE)], axis=0)       # (8C, 4C)
    w_yz = wyz.reshape(C, D_NODE)                                     # (C, 4C)

    sel = np.zeros((2, D_NODE), np.int32)
    for u in range(C):
        for m in range(3):
            sel[0, C + 3 * u + m] = m    # lanes < C stay 0 (-> Ex)
    sel[1, 2::4] = 1                     # output cols 4c+2 -> Ey, 4c+3 -> Ez

    return (jnp.asarray(w_pq, jnp.bfloat16),
            jnp.asarray(w_yz, jnp.bfloat16),
            jnp.asarray(sel))


# --------------------------------------------------------------------------
# Wrapper
# --------------------------------------------------------------------------
def electrostatic_field_interaction_block(node_feats, multipole_feats,
                                          params=None, fused=None, tile_n=2048):
    """node_feats: [N, 4C] native e3nn flat layout. multipole_feats: [N, 4].
    Returns [N, C, 4] (reshape_irreps output: [:, :, 0]=0e, [:, :, 1:4]=1o)."""
    node_feats = jnp.asarray(node_feats)
    if node_feats.dtype not in (jnp.float32, jnp.bfloat16):
        node_feats = node_feats.astype(jnp.float32)
    multipole_feats = jnp.asarray(multipole_feats).astype(jnp.float32)

    if fused is None:
        fused = build_fused_weights(params)
    w_pq, w_yz, sel = fused

    n = node_feats.shape[0]
    n_rows = n
    if n < 8:   # tiny-batch corner case only: keep block rows <= array rows
        node_feats = jnp.pad(node_feats, ((0, 8 - n), (0, 0)))
        multipole_feats = jnp.pad(multipole_feats, ((0, 8 - n), (0, 0)))
        n_rows = 8

    # Tile choice: multiple of 8, never larger than the array, and >=2 grid
    # steps when possible so v7x's two TensorCores both get work.
    tn = min(_round_up(max(int(tile_n), 8), 8), (n_rows // 8) * 8)
    if n_rows >= 16:
        tn = min(tn, _round_up((n_rows + 1) // 2, 8))
    tn = max(tn, 8)
    grid = (pl.cdiv(n_rows, tn),)

    out_flat = pl.pallas_call(
        _field_block_kernel,
        out_shape=jax.ShapeDtypeStruct((n_rows, D_NODE), jnp.float32),
        grid=grid,
        in_specs=[
            pl.BlockSpec((tn, D_NODE), lambda i: (i, 0)),
            pl.BlockSpec((tn, D_FIELD), lambda i: (i, 0)),
            pl.BlockSpec((2, D_NODE), lambda i: (0, 0)),
            pl.BlockSpec((2 * D_NODE, D_NODE), lambda i: (0, 0)),
            pl.BlockSpec((C, D_NODE), lambda i: (0, 0)),
        ],
        out_specs=pl.BlockSpec((tn, D_NODE), lambda i: (i, 0)),
        compiler_params=pltpu.CompilerParams(dimension_semantics=("parallel",)),
    )(node_feats, multipole_feats, sel, w_pq, w_yz)

    # reshape_irreps: interleaved flat [N, 4C] -> [N, C, 4]  (free reshape)
    return out_flat[:n].reshape(n, C, 4)


# --------------------------------------------------------------------------
# Pure-JAX reference (same forward math, f32, from the raw params)
# --------------------------------------------------------------------------
def reference(node_feats, multipole_feats, params):
    n = node_feats.shape[0]
    x0 = node_feats[:, :C]
    x1 = node_feats[:, C:].reshape(n, C, 3)
    f0 = multipole_feats[:, 0]
    f1 = multipole_feats[:, 1:4]
    y0 = x0 @ params["w0_up"] / math.sqrt(C)
    y1 = jnp.einsum("num,uw->nwm", x1, params["w1_up"]) / math.sqrt(C)
    wtp = params["w_tp"]
    m0a = y0 * f0[:, None] * wtp[0][None, :]
    m0b = jnp.einsum("num,nm->nu", y1, f1) / math.sqrt(3.0) * wtp[1][None, :]
    m1a = y0[:, :, None] * f1[:, None, :] * wtp[2][None, :, None]
    m1b = y1 * f0[:, None, None] * wtp[3][None, :, None]
    m0 = jnp.concatenate([m0a, m0b], axis=1)
    m1 = jnp.concatenate([m1a, m1b], axis=1)
    out0 = m0 @ params["wl0"] / math.sqrt(2 * C)
    out1 = jnp.einsum("num,uw->nwm", m1, params["wl1"]) / math.sqrt(2 * C)
    return jnp.concatenate([out0[:, :, None], out1], axis=2)


if __name__ == "__main__":
    N = 300  # deliberately not a multiple of 8 or the tile -> exercises ragged blocks
    key = jax.random.PRNGKey(0)
    k_nf, k_mp, k0, k1, k2, k3, k4 = jax.random.split(key, 7)

    node_feats = jax.random.normal(k_nf, (N, D_NODE), dtype=jnp.float32)
    multipole_feats = jax.random.normal(k_mp, (N, D_FIELD), dtype=jnp.float32)

    # e3nn-style internal weights ~ N(0, 1), deterministic
    params = {
        "w0_up": jax.random.normal(k0, (C, C), dtype=jnp.float32),
        "w1_up": jax.random.normal(k1, (C, C), dtype=jnp.float32),
        "w_tp": jax.random.normal(k2, (4, C), dtype=jnp.float32),
        "wl0": jax.random.normal(k3, (2 * C, C), dtype=jnp.float32),
        "wl1": jax.random.normal(k4, (2 * C, C), dtype=jnp.float32),
    }

    fused = build_fused_weights(params)   # hoisted out of the call path

    ref = jax.block_until_ready(reference(node_feats, multipole_feats, params))

    # Default tile (auto-clamped to a 2-step grid) + a small tile for a longer
    # grid with a ragged last block.
    for tile in (2048, 64):
        out = electrostatic_field_interaction_block(
            node_feats, multipole_feats, fused=fused, tile_n=tile)
        out = jax.block_until_ready(out)
        assert out.shape == (N, C, 4), out.shape
        # bf16 MXU operands -> tolerance loosened vs. the pure-f32 reference.
        np.testing.assert_allclose(np.asarray(out), np.asarray(ref),
                                   rtol=2e-2, atol=3e-2)

    print("KERNEL_OK")
</pallas_src>

<mosaic_0001>
module attributes {stable_mosaic.version = 11 : i64} {
  func.func @_field_block_kernel(%arg0: i32, %arg1: memref<152x128xf32, #tpu.memory_space<vmem>>, %arg2: memref<152x4xf32, #tpu.memory_space<vmem>>, %arg3: memref<2x128xi32, #tpu.memory_space<vmem>>, %arg4: memref<256x128xbf16, #tpu.memory_space<vmem>>, %arg5: memref<32x128xbf16, #tpu.memory_space<vmem>>, %arg6: memref<152x128xf32, #tpu.memory_space<vmem>>) attributes {dimension_semantics = [#tpu.dimension_semantics<parallel>], iteration_bounds = array<i64: 2>, scalar_prefetch = 0 : i64, scratch_operands = 0 : i64, tpu.core_type = #tpu.core_type<tc>, window_params = [{transform_indices = @transform_0, window_bounds = array<i64: 152, 128>}, {transform_indices = @transform_1, window_bounds = array<i64: 152, 4>}, {pipeline_mode = #tpu.pipeline_mode<synchronous>, transform_indices = @transform_2, window_bounds = array<i64: 2, 128>}, {pipeline_mode = #tpu.pipeline_mode<synchronous>, transform_indices = @transform_3, window_bounds = array<i64: 256, 128>}, {pipeline_mode = #tpu.pipeline_mode<synchronous>, transform_indices = @transform_4, window_bounds = array<i64: 32, 128>}, {transform_indices = @transform_5, window_bounds = array<i64: 152, 128>}]} {
    %c0 = arith.constant 0 : index
    %c0_0 = arith.constant 0 : index
    %0 = vector.load %arg1[%c0, %c0_0] : memref<152x128xf32, #tpu.memory_space<vmem>>, vector<152x128xf32>
    %c0_1 = arith.constant 0 : index
    %c0_2 = arith.constant 0 : index
    %1 = vector.load %arg2[%c0_1, %c0_2] : memref<152x4xf32, #tpu.memory_space<vmem>>, vector<152x4xf32>
    %c0_3 = arith.constant 0 : index
    %c0_4 = arith.constant 0 : index
    %2 = vector.load %arg3[%c0_3, %c0_4] : memref<2x128xi32, #tpu.memory_space<vmem>>, vector<2x128xi32>
    %3 = vector.extract_strided_slice %2 {offsets = [0, 0], sizes = [1, 128], strides = [1, 1]} : vector<2x128xi32> to vector<1x128xi32>
    %4 = vector.extract_strided_slice %2 {offsets = [1, 0], sizes = [1, 128], strides = [1, 1]} : vector<2x128xi32> to vector<1x128xi32>
    %5 = vector.extract_strided_slice %1 {offsets = [0, 0], sizes = [152, 1], strides = [1, 1]} : vector<152x4xf32> to vector<152x1xf32>
    %6 = vector.extract_strided_slice %1 {offsets = [0, 1], sizes = [152, 1], strides = [1, 1]} : vector<152x4xf32> to vector<152x1xf32>
    %7 = vector.extract_strided_slice %1 {offsets = [0, 2], sizes = [152, 1], strides = [1, 1]} : vector<152x4xf32> to vector<152x1xf32>
    %8 = vector.extract_strided_slice %1 {offsets = [0, 3], sizes = [152, 1], strides = [1, 1]} : vector<152x4xf32> to vector<152x1xf32>
    %c0_i32 = arith.constant 0 : i32
    %9 = vector.broadcast %c0_i32 : i32 to vector<1x128xi32>
    %10 = arith.cmpi eq, %3, %9 : vector<1x128xi32>
    %c1_i32 = arith.constant 1 : i32
    %11 = vector.broadcast %c1_i32 : i32 to vector<1x128xi32>
    %12 = arith.cmpi eq, %3, %11 : vector<1x128xi32>
    %13 = vector.shape_cast %12 : vector<1x128xi1> to vector<1x128xi1>
    %14 = vector.broadcast %13 : vector<1x128xi1> to vector<152x128xi1>
    %15 = vector.shape_cast %7 : vector<152x1xf32> to vector<152x1xf32>
    %16 = vector.broadcast %15 : vector<152x1xf32> to vector<152x128xf32>
    %17 = vector.shape_cast %8 : vector<152x1xf32> to vector<152x1xf32>
    %18 = vector.broadcast %17 : vector<152x1xf32> to vector<152x128xf32>
    %19 = arith.select %14, %16, %18 : vector<152x128xi1>, vector<152x128xf32>
    %20 = vector.shape_cast %10 : vector<1x128xi1> to vector<1x128xi1>
    %21 = vector.broadcast %20 : vector<1x128xi1> to vector<152x128xi1>
    %22 = vector.shape_cast %6 : vector<152x1xf32> to vector<152x1xf32>
    %23 = vector.broadcast %22 : vector<152x1xf32> to vector<152x128xf32>
    %24 = arith.select %21, %23, %19 : vector<152x128xi1>, vector<152x128xf32>
    %25 = vector.broadcast %5 : vector<152x1xf32> to vector<152x128xf32>
    %26 = arith.mulf %25, %0 : vector<152x128xf32>
    %27 = arith.mulf %24, %0 : vector<152x128xf32>
    %28 = tpu.concatenate %26, %27 in 1 : vector<152x128xf32>, vector<152x128xf32> -> vector<152x256xf32>
    %29 = arith.truncf %28 : vector<152x256xf32> to vector<152x256xbf16>
    %c0_5 = arith.constant 0 : index
    %c0_6 = arith.constant 0 : index
    %30 = vector.load %arg4[%c0_5, %c0_6] : memref<256x128xbf16, #tpu.memory_space<vmem>>, vector<256x128xbf16>
    %cst = arith.constant dense<0.000000e+00> : vector<152x128xf32>
    %31 = tpu.matmul %29, %30, %cst {dimension_numbers = #tpu.dot_dimension_numbers<[1], [0], [0], [1], [0, 0, 1, 1], [], []>} : vector<152x256xbf16>, vector<256x128xbf16>, vector<152x128xf32> -> vector<152x128xf32>
    %32 = vector.extract_strided_slice %0 {offsets = [0, 0], sizes = [152, 32], strides = [1, 1]} : vector<152x128xf32> to vector<152x32xf32>
    %33 = arith.truncf %32 : vector<152x32xf32> to vector<152x32xbf16>
    %c0_7 = arith.constant 0 : index
    %c0_8 = arith.constant 0 : index
    %34 = vector.load %arg5[%c0_7, %c0_8] : memref<32x128xbf16, #tpu.memory_space<vmem>>, vector<32x128xbf16>
    %cst_9 = arith.constant dense<0.000000e+00> : vector<152x128xf32>
    %35 = tpu.matmul %33, %34, %cst_9 {dimension_numbers = #tpu.dot_dimension_numbers<[1], [0], [0], [1], [0, 0, 1, 1], [], []>} : vector<152x32xbf16>, vector<32x128xbf16>, vector<152x128xf32> -> vector<152x128xf32>
    %c1_i32_10 = arith.constant 1 : i32
    %36 = vector.broadcast %c1_i32_10 : i32 to vector<1x128xi32>
    %37 = arith.cmpi eq, %4, %36 : vector<1x128xi32>
    %38 = vector.shape_cast %37 : vector<1x128xi1> to vector<1x128xi1>
    %39 = vector.broadcast %38 : vector<1x128xi1> to vector<152x128xi1>
    %40 = vector.shape_cast %7 : vector<152x1xf32> to vector<152x1xf32>
    %41 = vector.broadcast %40 : vector<152x1xf32> to vector<152x128xf32>
    %42 = vector.shape_cast %8 : vector<152x1xf32> to vector<152x1xf32>
    %43 = vector.broadcast %42 : vector<152x1xf32> to vector<152x128xf32>
    %44 = arith.select %39, %41, %43 : vector<152x128xi1>, vector<152x128xf32>
    %45 = arith.mulf %44, %35 : vector<152x128xf32>
    %46 = arith.addf %31, %45 : vector<152x128xf32>
    %c0_11 = arith.constant 0 : index
    %c0_12 = arith.constant 0 : index
    %47 = vector.load %arg6[%c0_11, %c0_12] : memref<152x128xf32, #tpu.memory_space<vmem>>, vector<152x128xf32>
    tpu.vector_store %arg6[%c0_11, %c0_12], %46 {strides = array<i32>} : memref<152x128xf32, #tpu.memory_space<vmem>>, vector<152x128xf32>,
    return
  }
  func.func @transform_0(%arg0: i32) -> (i32, i32) {
    %c0_i32 = arith.constant 0 : i32
    %c0_i32_0 = arith.constant 0 : i32
    return %arg0, %c0_i32 : i32, i32
  }
  func.func @transform_1(%arg0: i32) -> (i32, i32) {
    %c0_i32 = arith.constant 0 : i32
    %c0_i32_0 = arith.constant 0 : i32
    return %arg0, %c0_i32 : i32, i32
  }
  func.func @transform_2(%arg0: i32) -> (i32, i32) {
    %c0_i32 = arith.constant 0 : i32
    %c0_i32_0 = arith.constant 0 : i32
    %c0_i32_1 = arith.constant 0 : i32
    return %c0_i32, %c0_i32_0 : i32, i32
  }
  func.func @transform_3(%arg0: i32) -> (i32, i32) {
    %c0_i32 = arith.constant 0 : i32
    %c0_i32_0 = arith.constant 0 : i32
    %c0_i32_1 = arith.constant 0 : i32
    return %c0_i32, %c0_i32_0 : i32, i32
  }
  func.func @transform_4(%arg0: i32) -> (i32, i32) {
    %c0_i32 = arith.constant 0 : i32
    %c0_i32_0 = arith.constant 0 : i32
    %c0_i32_1 = arith.constant 0 : i32
    return %c0_i32, %c0_i32_0 : i32, i32
  }
  func.func @transform_5(%arg0: i32) -> (i32, i32) {
    %c0_i32 = arith.constant 0 : i32
    %c0_i32_0 = arith.constant 0 : i32
    return %arg0, %c0_i32 : i32, i32
  }
}

</mosaic_0001>

<llo_original>
// kernel: tpu_custom_call.1
$region0: #{tpu_custom_call.1}
  #allocation0 [shape = 'u32[]', space=smem, size = 0x4, offset = 0x4, fixed_abs, tag = 'smem constant byte address 0x4 - core index']
  #allocation1 [shape = 'u32[72,128]{1,0:T(1,128)}', space=vmem, size = 0x9000, scoped, tag = 'internal scratch']
  %s0 = inlined_call_operand.vmem [shape: f32[300,128], index: 0, kind: input, shape index: {}]
  %s1 = inlined_call_operand.vmem [shape: f32[300,4], index: 1, kind: input, shape index: {}]
  %s2 = inlined_call_operand.vmem [shape: s32[2,128], index: 2, kind: input, shape index: {}]
  %s3 = inlined_call_operand.hbm [shape: bf16[256,128], index: 3, kind: input, shape index: {}]
  %s4 = inlined_call_operand.hbm [shape: bf16[32,128], index: 4, kind: input, shape index: {}]
  %s5 = inlined_call_operand.hbm [shape: f32[300,128], index: 5, kind: output, shape index: {}]
  %s6 = sld [smem:[#allocation0]]
  $region61: #{tpu_custom_call.1} parent=0
    _
  %s8 = ssub.s32 1, %s6
  %s9 = scalar_select 0, %s8, %s6
  $region1: #{tpu_custom_call.1} parent=0
    #allocation2 [shape = 'u8[65536]{0}', space=vmem, size = 0x10000, scoped, tag = 'input window, operand 3, single buffered']
    #allocation3 [shape = 's32[2]{0}', space=sflag, size = 0x8, scoped, tag = 'scoped memory for tpu_custom_call.1']
    #allocation4 [shape = 's32[2]{0}', space=sflag, size = 0x8, scoped, tag = 'scoped memory for tpu_custom_call.1']
    #allocation5 [shape = 'u8[8192]{0}', space=vmem, size = 0x2000, scoped, tag = 'input window, operand 4, single buffered']
    #allocation6 [shape = 's32[1]{0}', space=sflag, size = 0x4, scoped, tag = 'scoped memory for tpu_custom_call.1']
    #allocation7 [shape = 'u8[155648]{0}', space=vmem, size = 0x26000, scoped, tag = 'output window, operand 0']
    %10 = vsyncpa [#allocation3], 0
    %11 = vsyncpa [#allocation6], 0
    %12 = vsyncpa [#allocation4], 0
    %s13 = scalar_lea.sflag [#allocation4], 1
    %14 = vsyncpa %s13, 0
    loop: start=0, step=1, limit=4
    $region2: #{tpu_custom_call.1} parent=1 // loop_pre_header
      _
    $region3: #{tpu_custom_call.1} parent=1 // loop_header
      %s16 = sphi 0, %s20
      %p17 = scmp.ge.s32.totalorder %s16, 4
      %s26 = sphi 0, %s28
      %s29 = sphi 0, %s26
      %s30 = sphi 0, %s29
      %s46 = sphi 0, %s30
      %s52 = sphi 0, %s54
      %s55 = sphi 0, %s52
      %s56 = sphi 0, %s55
      %s72 = sphi 0, %s56
      %s76 = sphi 0, %s76
      %s78 = sphi 0, %s76
      %s79 = sphi 0, %s78
      %s93 = sphi 0, %s79
      %s97 = sphi 0, %s97
      %s99 = sphi 0, %s97
      %s100 = sphi 0, %s99
      %s114 = sphi 0, %s100
      %s118 = sphi 0, %s118
      %s120 = sphi 0, %s118
      %s121 = sphi 0, %s120
      %s135 = sphi 0, %s121
      %s141 = sphi 0, %s143
      %s144 = sphi 0, %s141
      %s145 = sphi 0, %s144
      %s161 = sphi 0, %s145
    $region4: #{tpu_custom_call.1} parent=1 // loop_header_branch
      %19 = sbr.rel (%p17) target = $region8
    $region5: #{tpu_custom_call.1} parent=1 // loop_body
      %s21 = ssub.s32 %s16, 1
      %s22 = ssub.s32 %s16, 2
      %s23 = sadd.s32 %s16, 1
      %s24 = ssub.s32 %s16, %s23
      %p25 = scmp.eq.s32.totalorder %s24, 0
      %s27 = sadd.s32 %s26, 1
      %s28 = scalar_select %p25, %s26, %s27
      %p31 = pneg %p25
      %p32 = scmp.eq.s32.totalorder %s16, 1
      %p33 = por %p31, %p32
      %p34 = scmp.ne.s32.totalorder %s26, %s29
      %p35 = scmp.eq.s32.totalorder %s16, 0
      %p36 = por %p34, %p35
      %p37 = scmp.ne.s32.totalorder %s26, %s29
      %p38 = scmp.eq.s32.totalorder %s21, 1
      %p39 = por %p37, %p38
      %p40 = scmp.ne.s32.totalorder %s29, %s30
      %p41 = scmp.eq.s32.totalorder %s21, 0
      %p42 = por %p40, %p41
      %p43 = scmp.ne.s32.totalorder %s29, %s30
      %p44 = scmp.eq.s32.totalorder %s22, 1
      %p45 = por %p43, %p44
      %p47 = scmp.ne.s32.totalorder %s30, %s46
      %p48 = scmp.eq.s32.totalorder %s22, 0
      %p49 = por %p47, %p48
      %s50 = ssub.s32 %s16, %s23
      %p51 = scmp.eq.s32.totalorder %s50, 0
      %s53 = sadd.s32 %s52, 1
      %s54 = scalar_select %p51, %s52, %s53
      %p57 = pneg %p51
      %p58 = scmp.eq.s32.totalorder %s16, 1
      %p59 = por %p57, %p58
      %p60 = scmp.ne.s32.totalorder %s52, %s55
      %p61 = scmp.eq.s32.totalorder %s16, 0
      %p62 = por %p60, %p61
      %p63 = scmp.ne.s32.totalorder %s52, %s55
      %p64 = scmp.eq.s32.totalorder %s21, 1
      %p65 = por %p63, %p64
      %p66 = scmp.ne.s32.totalorder %s55, %s56
      %p67 = scmp.eq.s32.totalorder %s21, 0
      %p68 = por %p66, %p67
      %p69 = scmp.ne.s32.totalorder %s55, %s56
      %p70 = scmp.eq.s32.totalorder %s22, 1
      %p71 = por %p69, %p70
      %p73 = scmp.ne.s32.totalorder %s56, %s72
      %p74 = scmp.eq.s32.totalorder %s22, 0
      %p75 = por %p73, %p74
      %s77 = sadd.s32 %s76, 1
      %p80 = scmp.eq.s32.totalorder %s16, 1
      %p81 = scmp.ne.s32.totalorder %s76, %s78
      %p82 = scmp.eq.s32.totalorder %s16, 0
      %p83 = por %p81, %p82
      %p84 = scmp.ne.s32.totalorder %s76, %s78
      %p85 = scmp.eq.s32.totalorder %s21, 1
      %p86 = por %p84, %p85
      %p87 = scmp.ne.s32.totalorder %s78, %s79
      %p88 = scmp.eq.s32.totalorder %s21, 0
      %p89 = por %p87, %p88
      %p90 = scmp.ne.s32.totalorder %s78, %s79
      %p91 = scmp.eq.s32.totalorder %s22, 1
      %p92 = por %p90, %p91
      %p94 = scmp.ne.s32.totalorder %s79, %s93
      %p95 = scmp.eq.s32.totalorder %s22, 0
      %p96 = por %p94, %p95
      %s98 = sadd.s32 %s97, 1
      %p101 = scmp.eq.s32.totalorder %s16, 1
      %p102 = scmp.ne.s32.totalorder %s97, %s99
      %p103 = scmp.eq.s32.totalorder %s16, 0
      %p104 = por %p102, %p103
      %p105 = scmp.ne.s32.totalorder %s97, %s99
      %p106 = scmp.eq.s32.totalorder %s21, 1
      %p107 = por %p105, %p106
      %p108 = scmp.ne.s32.totalorder %s99, %s100
      %p109 = scmp.eq.s32.totalorder %s21, 0
      %p110 = por %p108, %p109
      %p111 = scmp.ne.s32.totalorder %s99, %s100
      %p112 = scmp.eq.s32.totalorder %s22, 1
      %p113 = por %p111, %p112
      %p115 = scmp.ne.s32.totalorder %s100, %s114
      %p116 = scmp.eq.s32.totalorder %s22, 0
      %p117 = por %p115, %p116
      %s119 = sadd.s32 %s118, 1
      %p122 = scmp.eq.s32.totalorder %s16, 1
      %p123 = scmp.ne.s32.totalorder %s118, %s120
      %p124 = scmp.eq.s32.totalorder %s16, 0
      %p125 = por %p123, %p124
      %p126 = scmp.ne.s32.totalorder %s118, %s120
      %p127 = scmp.eq.s32.totalorder %s21, 1
      %p128 = por %p126, %p127
      %p129 = scmp.ne.s32.totalorder %s120, %s121
      %p130 = scmp.eq.s32.totalorder %s21, 0
      %p131 = por %p129, %p130
      %p132 = scmp.ne.s32.totalorder %s120, %s121
      %p133 = scmp.eq.s32.totalorder %s22, 1
      %p134 = por %p132, %p133
      %p136 = scmp.ne.s32.totalorder %s121, %s135
      %p137 = scmp.eq.s32.totalorder %s22, 0
      %p138 = por %p136, %p137
      %s139 = ssub.s32 %s16, %s23
      %p140 = scmp.eq.s32.totalorder %s139, 0
      %s142 = sadd.s32 %s141, 1
      %s143 = scalar_select %p140, %s141, %s142
      %p146 = pneg %p140
      %p147 = scmp.eq.s32.totalorder %s16, 1
      %p148 = por %p146, %p147
      %p149 = scmp.ne.s32.totalorder %s141, %s144
      %p150 = scmp.eq.s32.totalorder %s16, 0
      %p151 = por %p149, %p150
      %p152 = scmp.ne.s32.totalorder %s141, %s144
      %p153 = scmp.eq.s32.totalorder %s21, 1
      %p154 = por %p152, %p153
      %p155 = scmp.ne.s32.totalorder %s144, %s145
      %p156 = scmp.eq.s32.totalorder %s21, 0
      %p157 = por %p155, %p156
      %p158 = scmp.ne.s32.totalorder %s144, %s145
      %p159 = scmp.eq.s32.totalorder %s22, 1
      %p160 = por %p158, %p159
      %p162 = scmp.ne.s32.totalorder %s145, %s161
      %p163 = scmp.eq.s32.totalorder %s22, 0
      %p164 = por %p162, %p163
      %p165 = scmp.le.s32.totalorder 1, %s16
      %p166 = scmp.lt.s32.totalorder %s16, 3
      %p167 = pnand %p165, %p166
      %p168 = pneg %p167
      // Predicated region
      $region9: #{tpu_custom_call.1} parent=5 // pred_check
        _
      $region10: #{tpu_custom_call.1} parent=5 // pred_check_branch
        %170 = sbr.rel (%p167) target = $region12
      $region11: #{tpu_custom_call.1} parent=5 // pred_region
        %s171 = ssub.s32 %s16, 1
        // Predicated region
        $region13: #{tpu_custom_call.1} parent=11 // pred_check
          %p172 = pneg %p89
        $region14: #{tpu_custom_call.1} parent=11 // pred_check_branch
          %174 = sbr.rel (%p172) target = $region16
        $region15: #{tpu_custom_call.1} parent=11 // pred_region
          _
        $region16: #{tpu_custom_call.1} parent=11 // pred_fallthru
          _
        // Predicated region
        $region17: #{tpu_custom_call.1} parent=11 // pred_check
          %p175 = pneg %p110
        $region18: #{tpu_custom_call.1} parent=11 // pred_check_branch
          %177 = sbr.rel (%p175) target = $region20
        $region19: #{tpu_custom_call.1} parent=11 // pred_region
          %179 = vsyncadd [#allocation3], 0
          %s180 = sshll.u32 %s3, 4
          %s181 = int_to_ptr.hbm [resolvable:$true] %s180
          %s182 = sshll.u32 [#allocation2], 4
          %s183 = int_to_ptr.vmem [resolvable:$true] %s182
          %188 = dma.hbm_to_vmem [thread:$0]  %s181, 2048, %s183, [#allocation3], 64, 64, 4
        $region20: #{tpu_custom_call.1} parent=11 // pred_fallthru
          _
        // Predicated region
        $region21: #{tpu_custom_call.1} parent=11 // pred_check
          %p189 = pneg %p131
        $region22: #{tpu_custom_call.1} parent=11 // pred_check_branch
          %191 = sbr.rel (%p189) target = $region24
        $region23: #{tpu_custom_call.1} parent=11 // pred_region
          %193 = vsyncadd [#allocation6], 0
          %s194 = sshll.u32 %s4, 4
          %s195 = int_to_ptr.hbm [resolvable:$true] %s194
          %s196 = sshll.u32 [#allocation5], 4
          %s197 = int_to_ptr.vmem [resolvable:$true] %s196
          %202 = dma.hbm_to_vmem [thread:$0]  %s195, 256, %s197, [#allocation6], 64, 64, 4
        $region24: #{tpu_custom_call.1} parent=11 // pred_fallthru
          _
      $region12: #{tpu_custom_call.1} parent=5 // pred_fallthru
        _
      %p203 = scmp.lt.s32.totalorder %s16, 2
      // Predicated region
      $region25: #{tpu_custom_call.1} parent=5 // pred_check
        %p204 = pneg %p203
      $region26: #{tpu_custom_call.1} parent=5 // pred_check_branch
        %206 = sbr.rel (%p204) target = $region28
      $region27: #{tpu_custom_call.1} parent=5 // pred_region
        // Predicated region
        $region29: #{tpu_custom_call.1} parent=27 // pred_check
          %p207 = pneg %p36
        $region30: #{tpu_custom_call.1} parent=27 // pred_check_branch
          %209 = sbr.rel (%p207) target = $region32
        $region31: #{tpu_custom_call.1} parent=27 // pred_region
          %s210 = smul.u32 19, %s16
          %p211 = scmp.lt.s32.totalorder %s210, 37
          %s212 = scalar_select %p211, %s210, 37
          %s213 = smul.addr %s212, 8
          %s214 = scalar_lea.vmem %s0, %s213
          %s215 = smul.u32 19, %s16
        $region32: #{tpu_custom_call.1} parent=27 // pred_fallthru
          _
        // Predicated region
        $region33: #{tpu_custom_call.1} parent=27 // pred_check
          %p216 = pneg %p62
        $region34: #{tpu_custom_call.1} parent=27 // pred_check_branch
          %218 = sbr.rel (%p216) target = $region36
        $region35: #{tpu_custom_call.1} parent=27 // pred_region
          %s219 = smul.u32 19, %s16
          %p220 = scmp.lt.s32.totalorder %s219, 37
          %s221 = scalar_select %p220, %s219, 37
          %s222 = smul.addr %s221, 8
          %s223 = scalar_lea.vmem %s1, %s222
          %s224 = smul.u32 19, %s16
        $region36: #{tpu_custom_call.1} parent=27 // pred_fallthru
          _
      $region28: #{tpu_custom_call.1} parent=5 // pred_fallthru
        _
      %p225 = scmp.le.s32.totalorder 1, %s16
      %p226 = scmp.lt.s32.totalorder %s16, 3
      %p227 = pnand %p225, %p226
      %p228 = pneg %p227
      // Predicated region
      $region37: #{tpu_custom_call.1} parent=5 // pred_check
        _
      $region38: #{tpu_custom_call.1} parent=5 // pred_check_branch
        %230 = sbr.rel (%p227) target = $region40
      $region39: #{tpu_custom_call.1} parent=5 // pred_region
        %s231 = ssub.s32 %s16, 1
        // Predicated region
        $region41: #{tpu_custom_call.1} parent=39 // pred_check
          %p232 = pneg %p110
        $region42: #{tpu_custom_call.1} parent=39 // pred_check_branch
          %234 = sbr.rel (%p232) target = $region44
        $region43: #{tpu_custom_call.1} parent=39 // pred_region
          %236 = dma.done [#allocation3], 2048
        $region44: #{tpu_custom_call.1} parent=39 // pred_fallthru
          _
        // Predicated region
        $region45: #{tpu_custom_call.1} parent=39 // pred_check
          %p237 = pneg %p131
        $region46: #{tpu_custom_call.1} parent=39 // pred_check_branch
          %239 = sbr.rel (%p237) target = $region48
        $region47: #{tpu_custom_call.1} parent=39 // pred_region
          %241 = dma.done [#allocation6], 256
        $region48: #{tpu_custom_call.1} parent=39 // pred_fallthru
          _
        %s242 = smul.u32 19, %s21
        %p243 = scmp.lt.s32.totalorder %s242, 37
        %s244 = scalar_select %p243, %s242, 37
        %s245 = smul.addr %s244, 8
        %s246 = scalar_lea.vmem %s0, %s245
        %p247 = pneg %p42
        %p248 = pneg %p39
        %s249 = smul.u32 19, %s21
        %p250 = scmp.lt.s32.totalorder %s249, 37
        %s251 = scalar_select %p250, %s249, 37
        %s252 = smul.addr %s251, 8
        %s253 = scalar_lea.vmem %s1, %s252
        %p254 = pneg %p68
        %p255 = pneg %p65
        %p256 = pneg %p89
        %p257 = pneg %p86
        %p258 = pneg %p110
        %p259 = pneg %p107
        %p260 = pneg %p131
        %p261 = pneg %p128
        %p262 = pneg %p157
        %p263 = pneg %p154
        %s264 = sand.u32 %s144, 1
        %s265 = scalar_lea.sflag [#allocation4], %s264
        %s266 = sand.u32 %s144, 1
        %s267 = smul.addr %s266, 152
        %s268 = scalar_lea.vmem [#allocation7], %s267
        %s269 = smul.u32 19, %s21
        %p270 = scmp.lt.s32.totalorder %s269, 37
        %s271 = scalar_select %p270, %s269, 37
        %s272 = smul.addr %s271, 8
        %s273 = scalar_lea.vmem %s0, %s272
        %s274 = smul.u32 19, %s21
        %s275 = smul.u32 19, %s21
        %p276 = scmp.lt.s32.totalorder %s275, 37
        %s277 = scalar_select %p276, %s275, 37
        %s278 = smul.addr %s277, 8
        %s279 = scalar_lea.vmem %s1, %s278
        %s280 = smul.u32 19, %s21
        %s281 = smul.u32 19, %s21
        %v283 = vld [vmem:[%s273] sm:$0xff]
        %v284 = vld [vmem:[%s273 + $0x8] sm:$0xff]
        %v285 = vld [vmem:[%s273 + $0x10] sm:$0xff]
        %v286 = vld [vmem:[%s273 + $0x18] sm:$0xff]
        %v287 = vld [vmem:[%s273 + $0x20] sm:$0xff]
        %v288 = vld [vmem:[%s273 + $0x28] sm:$0xff]
        %v289 = vld [vmem:[%s273 + $0x30] sm:$0xff]
        %v290 = vld [vmem:[%s273 + $0x38] sm:$0xff]
        %v291 = vld [vmem:[%s273 + $0x40] sm:$0xff]
        %v292 = vld [vmem:[%s273 + $0x48] sm:$0xff]
        %v293 = vld [vmem:[%s273 + $0x50] sm:$0xff]
        %v294 = vld [vmem:[%s273 + $0x58] sm:$0xff]
        %v295 = vld [vmem:[%s273 + $0x60] sm:$0xff]
        %v296 = vld [vmem:[%s273 + $0x68] sm:$0xff]
        %v297 = vld [vmem:[%s273 + $0x70] sm:$0xff]
        %v298 = vld [vmem:[%s273 + $0x78] sm:$0xff]
        %v299 = vld [vmem:[%s273 + $0x80] sm:$0xff]
        %v300 = vld [vmem:[%s273 + $0x88] sm:$0xff]
        %v301 = vld [vmem:[%s273 + $0x90] sm:$0xff]
        %v302 = vld [vmem:[%s279] sm:$0xff]
        %v303 = vld [vmem:[%s279 + $0x8] sm:$0xff]
        %v304 = vld [vmem:[%s279 + $0x10] sm:$0xff]
        %v305 = vld [vmem:[%s279 + $0x18] sm:$0xff]
        %v306 = vld [vmem:[%s279 + $0x20] sm:$0xff]
        %v307 = vld [vmem:[%s279 + $0x28] sm:$0xff]
        %v308 = vld [vmem:[%s279 + $0x30] sm:$0xff]
        %v309 = vld [vmem:[%s279 + $0x38] sm:$0xff]
        %v310 = vld [vmem:[%s279 + $0x40] sm:$0xff]
        %v311 = vld [vmem:[%s279 + $0x48] sm:$0xff]
        %v312 = vld [vmem:[%s279 + $0x50] sm:$0xff]
        %v313 = vld [vmem:[%s279 + $0x58] sm:$0xff]
        %v314 = vld [vmem:[%s279 + $0x60] sm:$0xff]
        %v315 = vld [vmem:[%s279 + $0x68] sm:$0xff]
        %v316 = vld [vmem:[%s279 + $0x70] sm:$0xff]
        %v317 = vld [vmem:[%s279 + $0x78] sm:$0xff]
        %v318 = vld [vmem:[%s279 + $0x80] sm:$0xff]
        %v319 = vld [vmem:[%s279 + $0x88] sm:$0xff]
        %v320 = vld [vmem:[%s279 + $0x90] sm:$0xff]
        %v321 = vld [vmem:[%s2] sm:$0x3]
        %vm322 = vcmp.eq.s32.totalorder %v321, 0
        %vm323 = vcmp.eq.s32.totalorder %v321, 1
        %v324 = vsel %vm323, 1, 0
        %v325 = vperm.slane %v324, 0
        %vm326 = vcmp.eq.s32.totalorder %v325, 1
        %328 = vset.pattern.permute.xlu0 2
        %329 = vperm.xlu0 %328, %v302
        %v330 = vpop.permute.xlu0 %329
        %333 = vset.pattern.permute.xlu0 2
        %334 = vperm.xlu0 %333, %v303
        %v335 = vpop.permute.xlu0 %334
        %338 = vset.pattern.permute.xlu0 2
        %339 = vperm.xlu0 %338, %v304
        %v340 = vpop.permute.xlu0 %339
        %343 = vset.pattern.permute.xlu0 2
        %344 = vperm.xlu0 %343, %v305
        %v345 = vpop.permute.xlu0 %344
        %348 = vset.pattern.permute.xlu0 2
        %349 = vperm.xlu0 %348, %v306
        %v350 = vpop.permute.xlu0 %349
        %353 = vset.pattern.permute.xlu0 2
        %354 = vperm.xlu0 %353, %v307
        %v355 = vpop.permute.xlu0 %354
        %358 = vset.pattern.permute.xlu0 2
        %359 = vperm.xlu0 %358, %v308
        %v360 = vpop.permute.xlu0 %359
        %363 = vset.pattern.permute.xlu0 2
        %364 = vperm.xlu0 %363, %v309
        %v365 = vpop.permute.xlu0 %364
        %368 = vset.pattern.permute.xlu0 2
        %369 = vperm.xlu0 %368, %v310
        %v370 = vpop.permute.xlu0 %369
        %373 = vset.pattern.permute.xlu0 2
        %374 = vperm.xlu0 %373, %v311
        %v375 = vpop.permute.xlu0 %374
        %378 = vset.pattern.permute.xlu0 2
        %379 = vperm.xlu0 %378, %v312
        %v380 = vpop.permute.xlu0 %379
        %383 = vset.pattern.permute.xlu0 2
        %384 = vperm.xlu0 %383, %v313
        %v385 = vpop.permute.xlu0 %384
        %388 = vset.pattern.permute.xlu0 2
        %389 = vperm.xlu0 %388, %v314
        %v390 = vpop.permute.xlu0 %389
        %393 = vset.pattern.permute.xlu0 2
        %394 = vperm.xlu0 %393, %v315
        %v395 = vpop.permute.xlu0 %394
        %398 = vset.pattern.permute.xlu0 2
        %399 = vperm.xlu0 %398, %v316
        %v400 = vpop.permute.xlu0 %399
        %403 = vset.pattern.permute.xlu0 2
        %404 = vperm.xlu0 %403, %v317
        %v405 = vpop.permute.xlu0 %404
        %408 = vset.pattern.permute.xlu0 2
        %409 = vperm.xlu0 %408, %v318
        %v410 = vpop.permute.xlu0 %409
        %413 = vset.pattern.permute.xlu0 2
        %414 = vperm.xlu0 %413, %v319
        %v415 = vpop.permute.xlu0 %414
        %418 = vset.pattern.permute.xlu0 2
        %419 = vperm.xlu0 %418, %v320
        %v420 = vpop.permute.xlu0 %419
        %422 = vset.pattern.permute.xlu0 3
        %423 = vperm.xlu0 %422, %v302
        %v424 = vpop.permute.xlu0 %423
        %426 = vset.pattern.permute.xlu0 3
        %427 = vperm.xlu0 %426, %v303
        %v428 = vpop.permute.xlu0 %427
        %430 = vset.pattern.permute.xlu0 3
        %431 = vperm.xlu0 %430, %v304
        %v432 = vpop.permute.xlu0 %431
        %434 = vset.pattern.permute.xlu0 3
        %435 = vperm.xlu0 %434, %v305
        %v436 = vpop.permute.xlu0 %435
        %438 = vset.pattern.permute.xlu0 3
        %439 = vperm.xlu0 %438, %v306
        %v440 = vpop.permute.xlu0 %439
        %442 = vset.pattern.permute.xlu0 3
        %443 = vperm.xlu0 %442, %v307
        %v444 = vpop.permute.xlu0 %443
        %446 = vset.pattern.permute.xlu0 3
        %447 = vperm.xlu0 %446, %v308
        %v448 = vpop.permute.xlu0 %447
        %450 = vset.pattern.permute.xlu0 3
        %451 = vperm.xlu0 %450, %v309
        %v452 = vpop.permute.xlu0 %451
        %454 = vset.pattern.permute.xlu0 3
        %455 = vperm.xlu0 %454, %v310
        %v456 = vpop.permute.xlu0 %455
        %458 = vset.pattern.permute.xlu0 3
        %459 = vperm.xlu0 %458, %v311
        %v460 = vpop.permute.xlu0 %459
        %462 = vset.pattern.permute.xlu0 3
        %463 = vperm.xlu0 %462, %v312
        %v464 = vpop.permute.xlu0 %463
        %466 = vset.pattern.permute.xlu0 3
        %467 = vperm.xlu0 %466, %v313
        %v468 = vpop.permute.xlu0 %467
        %470 = vset.pattern.permute.xlu0 3
        %471 = vperm.xlu0 %470, %v314
        %v472 = vpop.permute.xlu0 %471
        %474 = vset.pattern.permute.xlu0 3
        %475 = vperm.xlu0 %474, %v315
        %v476 = vpop.permute.xlu0 %475
        %478 = vset.pattern.permute.xlu0 3
        %479 = vperm.xlu0 %478, %v316
        %v480 = vpop.permute.xlu0 %479
        %482 = vset.pattern.permute.xlu0 3
        %483 = vperm.xlu0 %482, %v317
        %v484 = vpop.permute.xlu0 %483
        %486 = vset.pattern.permute.xlu0 3
        %487 = vperm.xlu0 %486, %v318
        %v488 = vpop.permute.xlu0 %487
        %490 = vset.pattern.permute.xlu0 3
        %491 = vperm.xlu0 %490, %v319
        %v492 = vpop.permute.xlu0 %491
        %494 = vset.pattern.permute.xlu0 3
        %495 = vperm.xlu0 %494, %v320
        %v496 = vpop.permute.xlu0 %495
        %v498 = vsel %vm326, %v330, %v424
        %v499 = vsel %vm326, %v335, %v428
        %v500 = vsel %vm326, %v340, %v432
        %v501 = vsel %vm326, %v345, %v436
        %v502 = vsel %vm326, %v350, %v440
        %v503 = vsel %vm326, %v355, %v444
        %v504 = vsel %vm326, %v360, %v448
        %v505 = vsel %vm326, %v365, %v452
        %v506 = vsel %vm326, %v370, %v456
        %v507 = vsel %vm326, %v375, %v460
        %v508 = vsel %vm326, %v380, %v464
        %v509 = vsel %vm326, %v385, %v468
        %v510 = vsel %vm326, %v390, %v472
        %v511 = vsel %vm326, %v395, %v476
        %v512 = vsel %vm326, %v400, %v480
        %v513 = vsel %vm326, %v405, %v484
        %v514 = vsel %vm326, %v410, %v488
        %v515 = vsel %vm326, %v415, %v492
        %v516 = vsel %vm326, %v420, %v496
        %v517 = vsel %vm322, 1, 0
        %v518 = vperm.slane %v517, 0
        %vm519 = vcmp.eq.s32.totalorder %v518, 1
        %520 = vset.pattern.permute.xlu0 1
        %521 = vperm.xlu0 %520, %v302
        %v522 = vpop.permute.xlu0 %521
        %524 = vset.pattern.permute.xlu0 1
        %525 = vperm.xlu0 %524, %v303
        %v526 = vpop.permute.xlu0 %525
        %528 = vset.pattern.permute.xlu0 1
        %529 = vperm.xlu0 %528, %v304
        %v530 = vpop.permute.xlu0 %529
        %532 = vset.pattern.permute.xlu0 1
        %533 = vperm.xlu0 %532, %v305
        %v534 = vpop.permute.xlu0 %533
        %536 = vset.pattern.permute.xlu0 1
        %537 = vperm.xlu0 %536, %v306
        %v538 = vpop.permute.xlu0 %537
        %540 = vset.pattern.permute.xlu0 1
        %541 = vperm.xlu0 %540, %v307
        %v542 = vpop.permute.xlu0 %541
        %544 = vset.pattern.permute.xlu0 1
        %545 = vperm.xlu0 %544, %v308
        %v546 = vpop.permute.xlu0 %545
        %548 = vset.pattern.permute.xlu0 1
        %549 = vperm.xlu0 %548, %v309
        %v550 = vpop.permute.xlu0 %549
        %552 = vset.pattern.permute.xlu0 1
        %553 = vperm.xlu0 %552, %v310
        %v554 = vpop.permute.xlu0 %553
        %556 = vset.pattern.permute.xlu0 1
        %557 = vperm.xlu0 %556, %v311
        %v558 = vpop.permute.xlu0 %557
        %560 = vset.pattern.permute.xlu0 1
        %561 = vperm.xlu0 %560, %v312
        %v562 = vpop.permute.xlu0 %561
        %564 = vset.pattern.permute.xlu0 1
        %565 = vperm.xlu0 %564, %v313
        %v566 = vpop.permute.xlu0 %565
        %568 = vset.pattern.permute.xlu0 1
        %569 = vperm.xlu0 %568, %v314
        %v570 = vpop.permute.xlu0 %569
        %572 = vset.pattern.permute.xlu0 1
        %573 = vperm.xlu0 %572, %v315
        %v574 = vpop.permute.xlu0 %573
        %576 = vset.pattern.permute.xlu0 1
        %577 = vperm.xlu0 %576, %v316
        %v578 = vpop.permute.xlu0 %577
        %580 = vset.pattern.permute.xlu0 1
        %581 = vperm.xlu0 %580, %v317
        %v582 = vpop.permute.xlu0 %581
        %584 = vset.pattern.permute.xlu0 1
        %585 = vperm.xlu0 %584, %v318
        %v586 = vpop.permute.xlu0 %585
        %588 = vset.pattern.permute.xlu0 1
        %589 = vperm.xlu0 %588, %v319
        %v590 = vpop.permute.xlu0 %589
        %592 = vset.pattern.permute.xlu0 1
        %593 = vperm.xlu0 %592, %v320
        %v594 = vpop.permute.xlu0 %593
        %v596 = vsel %vm519, %v522, %v498
        %v597 = vsel %vm519, %v526, %v499
        %v598 = vsel %vm519, %v530, %v500
        %v599 = vsel %vm519, %v534, %v501
        %v600 = vsel %vm519, %v538, %v502
        %v601 = vsel %vm519, %v542, %v503
        %v602 = vsel %vm519, %v546, %v504
        %v603 = vsel %vm519, %v550, %v505
        %v604 = vsel %vm519, %v554, %v506
        %v605 = vsel %vm519, %v558, %v507
        %v606 = vsel %vm519, %v562, %v508
        %v607 = vsel %vm519, %v566, %v509
        %v608 = vsel %vm519, %v570, %v510
        %v609 = vsel %vm519, %v574, %v511
        %v610 = vsel %vm519, %v578, %v512
        %v611 = vsel %vm519, %v582, %v513
        %v612 = vsel %vm519, %v586, %v514
        %v613 = vsel %vm519, %v590, %v515
        %v614 = vsel %vm519, %v594, %v516
        %615 = vset.pattern.permute.xlu0 0
        %616 = vperm.xlu0 %615, %v302
        %v617 = vpop.permute.xlu0 %616
        %619 = vset.pattern.permute.xlu0 0
        %620 = vperm.xlu0 %619, %v303
        %v621 = vpop.permute.xlu0 %620
        %623 = vset.pattern.permute.xlu0 0
        %624 = vperm.xlu0 %623, %v304
        %v625 = vpop.permute.xlu0 %624
        %627 = vset.pattern.permute.xlu0 0
        %628 = vperm.xlu0 %627, %v305
        %v629 = vpop.permute.xlu0 %628
        %631 = vset.pattern.permute.xlu0 0
        %632 = vperm.xlu0 %631, %v306
        %v633 = vpop.permute.xlu0 %632
        %635 = vset.pattern.permute.xlu0 0
        %636 = vperm.xlu0 %635, %v307
        %v637 = vpop.permute.xlu0 %636
        %639 = vset.pattern.permute.xlu0 0
        %640 = vperm.xlu0 %639, %v308
        %v641 = vpop.permute.xlu0 %640
        %643 = vset.pattern.permute.xlu0 0
        %644 = vperm.xlu0 %643, %v309
        %v645 = vpop.permute.xlu0 %644
        %647 = vset.pattern.permute.xlu0 0
        %648 = vperm.xlu0 %647, %v310
        %v649 = vpop.permute.xlu0 %648
        %651 = vset.pattern.permute.xlu0 0
        %652 = vperm.xlu0 %651, %v311
        %v653 = vpop.permute.xlu0 %652
        %655 = vset.pattern.permute.xlu0 0
        %656 = vperm.xlu0 %655, %v312
        %v657 = vpop.permute.xlu0 %656
        %659 = vset.pattern.permute.xlu0 0
        %660 = vperm.xlu0 %659, %v313
        %v661 = vpop.permute.xlu0 %660
        %663 = vset.pattern.permute.xlu0 0
        %664 = vperm.xlu0 %663, %v314
        %v665 = vpop.permute.xlu0 %664
        %667 = vset.pattern.permute.xlu0 0
        %668 = vperm.xlu0 %667, %v315
        %v669 = vpop.permute.xlu0 %668
        %671 = vset.pattern.permute.xlu0 0
        %672 = vperm.xlu0 %671, %v316
        %v673 = vpop.permute.xlu0 %672
        %675 = vset.pattern.permute.xlu0 0
        %676 = vperm.xlu0 %675, %v317
        %v677 = vpop.permute.xlu0 %676
        %679 = vset.pattern.permute.xlu0 0
        %680 = vperm.xlu0 %679, %v318
        %v681 = vpop.permute.xlu0 %680
        %683 = vset.pattern.permute.xlu0 0
        %684 = vperm.xlu0 %683, %v319
        %v685 = vpop.permute.xlu0 %684
        %687 = vset.pattern.permute.xlu0 0
        %688 = vperm.xlu0 %687, %v320
        %v689 = vpop.permute.xlu0 %688
        %v691 = vmul.f32 %v617, %v283
        %v692 = vmul.f32 %v621, %v284
        %v693 = vmul.f32 %v625, %v285
        %v694 = vmul.f32 %v629, %v286
        %v695 = vmul.f32 %v633, %v287
        %v696 = vmul.f32 %v637, %v288
        %v697 = vmul.f32 %v641, %v289
        %v698 = vmul.f32 %v645, %v290
        %v699 = vmul.f32 %v649, %v291
        %v700 = vmul.f32 %v653, %v292
        %v701 = vmul.f32 %v657, %v293
        %v702 = vmul.f32 %v661, %v294
        %v703 = vmul.f32 %v665, %v295
        %v704 = vmul.f32 %v669, %v296
        %v705 = vmul.f32 %v673, %v297
        %v706 = vmul.f32 %v677, %v298
        %v707 = vmul.f32 %v681, %v299
        %v708 = vmul.f32 %v685, %v300
        %v709 = vmul.f32 %v689, %v301
        %v710 = vmul.f32 %v596, %v283
        %v711 = vmul.f32 %v597, %v284
        %v712 = vmul.f32 %v598, %v285
        %v713 = vmul.f32 %v599, %v286
        %v714 = vmul.f32 %v600, %v287
        %v715 = vmul.f32 %v601, %v288
        %v716 = vmul.f32 %v602, %v289
        %v717 = vmul.f32 %v603, %v290
        %v718 = vmul.f32 %v604, %v291
        %v719 = vmul.f32 %v605, %v292
        %v720 = vmul.f32 %v606, %v293
        %v721 = vmul.f32 %v607, %v294
        %v722 = vmul.f32 %v608, %v295
        %v723 = vmul.f32 %v609, %v296
        %v724 = vmul.f32 %v610, %v297
        %v725 = vmul.f32 %v611, %v298
        %v726 = vmul.f32 %v612, %v299
        %v727 = vmul.f32 %v613, %v300
        %v728 = vmul.f32 %v614, %v301
        %v729 = vpack.c.bf16 %v692, %v691
        %v730 = vpack.c.bf16 %v711, %v710
        %v731 = vpack.c.bf16 %v694, %v693
        %v732 = vpack.c.bf16 %v713, %v712
        %v733 = vpack.c.bf16 %v696, %v695
        %v734 = vpack.c.bf16 %v715, %v714
        %v735 = vpack.c.bf16 %v698, %v697
        %v736 = vpack.c.bf16 %v717, %v716
        %v737 = vpack.c.bf16 %v700, %v699
        %v738 = vpack.c.bf16 %v719, %v718
        %v739 = vpack.c.bf16 %v702, %v701
        %v740 = vpack.c.bf16 %v721, %v720
        %v741 = vpack.c.bf16 %v704, %v703
        %v742 = vpack.c.bf16 %v723, %v722
        %v743 = vpack.c.bf16 %v706, %v705
        %v744 = vpack.c.bf16 %v725, %v724
        %v745 = vpack.c.bf16 %v708, %v707
        %v746 = vpack.c.bf16 %v727, %v726
        %v747 = vpack.c.bf16 %v709, %v709
        %v748 = vpack.c.bf16 %v728, %v728
        %v749 = vld [vmem:[#allocation2] sm:$0xf]
        %v750 = vld [vmem:[#allocation2 + $0x4] sm:$0xf]
        %v751 = vld [vmem:[#allocation2 + $0x8] sm:$0xf]
        %v752 = vld [vmem:[#allocation2 + $0xc] sm:$0xf]
        %v753 = vld [vmem:[#allocation2 + $0x10] sm:$0xf]
        %v754 = vld [vmem:[#allocation2 + $0x14] sm:$0xf]
        %v755 = vld [vmem:[#allocation2 + $0x18] sm:$0xf]
        %v756 = vld [vmem:[#allocation2 + $0x1c] sm:$0xf]
        %v757 = vld [vmem:[#allocation2 + $0x20] sm:$0xf]
        %v758 = vld [vmem:[#allocation2 + $0x24] sm:$0xf]
        %v759 = vld [vmem:[#allocation2 + $0x28] sm:$0xf]
        %v760 = vld [vmem:[#allocation2 + $0x2c] sm:$0xf]
        %v761 = vld [vmem:[#allocation2 + $0x30] sm:$0xf]
        %v762 = vld [vmem:[#allocation2 + $0x34] sm:$0xf]
        %v763 = vld [vmem:[#allocation2 + $0x38] sm:$0xf]
        %v764 = vld [vmem:[#allocation2 + $0x3c] sm:$0xf]
        %v765 = vld [vmem:[#allocation2 + $0x40] sm:$0xf]
        %v766 = vld [vmem:[#allocation2 + $0x44] sm:$0xf]
        %v767 = vld [vmem:[#allocation2 + $0x48] sm:$0xf]
        %v768 = vld [vmem:[#allocation2 + $0x4c] sm:$0xf]
        %v769 = vld [vmem:[#allocation2 + $0x50] sm:$0xf]
        %v770 = vld [vmem:[#allocation2 + $0x54] sm:$0xf]
        %v771 = vld [vmem:[#allocation2 + $0x58] sm:$0xf]
        %v772 = vld [vmem:[#allocation2 + $0x5c] sm:$0xf]
        %v773 = vld [vmem:[#allocation2 + $0x60] sm:$0xf]
        %v774 = vld [vmem:[#allocation2 + $0x64] sm:$0xf]
        %v775 = vld [vmem:[#allocation2 + $0x68] sm:$0xf]
        %v776 = vld [vmem:[#allocation2 + $0x6c] sm:$0xf]
        %v777 = vld [vmem:[#allocation2 + $0x70] sm:$0xf]
        %v778 = vld [vmem:[#allocation2 + $0x74] sm:$0xf]
        %v779 = vld [vmem:[#allocation2 + $0x78] sm:$0xf]
        %v780 = vld [vmem:[#allocation2 + $0x7c] sm:$0xf]
        %v781 = vpack.c.bf16 %v284, %v283
        %v782 = vpack.c.bf16 %v286, %v285
        %v783 = vpack.c.bf16 %v288, %v287
        %v784 = vpack.c.bf16 %v290, %v289
        %v785 = vpack.c.bf16 %v292, %v291
        %v786 = vpack.c.bf16 %v294, %v293
        %v787 = vpack.c.bf16 %v296, %v295
        %v788 = vpack.c.bf16 %v298, %v297
        %v789 = vpack.c.bf16 %v300, %v299
        %v790 = vpack.c.bf16 %v301, %v301
        %v791 = vld [vmem:[#allocation5] sm:$0xf]
        %v792 = vld [vmem:[#allocation5 + $0x4] sm:$0xf]
        %v793 = vld [vmem:[#allocation5 + $0x8] sm:$0xf]
        %v794 = vld [vmem:[#allocation5 + $0xc] sm:$0xf]
        %v799 = vunpack.c.l.b16 %v791
        %v800 = vunpack.c.l.b16 %v792
        %v801 = vunpack.c.l.b16 %v793
        %v802 = vunpack.c.l.b16 %v794
        %v803 = vpack.c.b16 %v800, %v799
        %v804 = vpack.c.b16 %v802, %v801
        %vm807 = vcmask 261120
        %v809 = vsel %vm807, %v781, 0
        %v812 = vsel %vm807, %v782, 0
        %v815 = vsel %vm807, %v783, 0
        %v818 = vsel %vm807, %v784, 0
        %v821 = vsel %vm807, %v785, 0
        %v824 = vsel %vm807, %v786, 0
        %v827 = vsel %vm807, %v787, 0
        %v830 = vsel %vm807, %v788, 0
        %v833 = vsel %vm807, %v789, 0
        %v836 = vsel %vm807, %v790, 0
        %838 = vmatpush.bf16.msra.mxu0 0
        %839 = vmatpush.bf16.msra.mxu0 0
        %840 = vmatpush.bf16.msra.mxu0 0
        %841 = vmatpush.bf16.msra.mxu0 0
        %842 = vmatpush.bf16.msra.mxu0 0
        %843 = vmatpush.bf16.msra.mxu0 0
        %844 = vmatpush.bf16.msra.mxu0 %v804
        %845 = vmatpush.bf16.msra.mxu0 %v803
        %846 = vmatmul.bf16.gmra.mxu0 %v809
        %v847 = vpop.f32.mrf.mxu0
        %v848 = vadd.f32 0.0, %v847
        %v849 = vpop.f32.mrf.mxu0
        %v850 = vadd.f32 0.0, %v849
        %851 = vmatmul.bf16.gmra.mxu0 %v812
        %v852 = vpop.f32.mrf.mxu0
        %v853 = vadd.f32 0.0, %v852
        %v854 = vpop.f32.mrf.mxu0
        %v855 = vadd.f32 0.0, %v854
        %856 = vmatmul.bf16.gmra.mxu0 %v815
        %v857 = vpop.f32.mrf.mxu0
        %v858 = vadd.f32 0.0, %v857
        %v859 = vpop.f32.mrf.mxu0
        %v860 = vadd.f32 0.0, %v859
        %861 = vmatmul.bf16.gmra.mxu0 %v818
        %v862 = vpop.f32.mrf.mxu0
        %v863 = vadd.f32 0.0, %v862
        %v864 = vpop.f32.mrf.mxu0
        %v865 = vadd.f32 0.0, %v864
        %866 = vmatmul.bf16.gmra.mxu0 %v821
        %v867 = vpop.f32.mrf.mxu0
        %v868 = vadd.f32 0.0, %v867
        %v869 = vpop.f32.mrf.mxu0
        %v870 = vadd.f32 0.0, %v869
        %871 = vmatmul.bf16.gmra.mxu0 %v824
        %v872 = vpop.f32.mrf.mxu0
        %v873 = vadd.f32 0.0, %v872
        %v874 = vpop.f32.mrf.mxu0
        %v875 = vadd.f32 0.0, %v874
        %876 = vmatmul.bf16.gmra.mxu0 %v827
        %v877 = vpop.f32.mrf.mxu0
        %v878 = vadd.f32 0.0, %v877
        %v879 = vpop.f32.mrf.mxu0
        %v880 = vadd.f32 0.0, %v879
        %881 = vmatmul.bf16.gmra.mxu0 %v830
        %v882 = vpop.f32.mrf.mxu0
        %v883 = vadd.f32 0.0, %v882
        %v884 = vpop.f32.mrf.mxu0
        %v885 = vadd.f32 0.0, %v884
        %886 = vmatmul.bf16.gmra.mxu0 %v833
        %v887 = vpop.f32.mrf.mxu0
        %v888 = vadd.f32 0.0, %v887
        %v889 = vpop.f32.mrf.mxu0
        %v890 = vadd.f32 0.0, %v889
        %891 = vmatmul.bf16.gmra.mxu0 %v836
        %v892 = vpop.f32.mrf.mxu0
        %v893 = vadd.f32 0.0, %v892
        %v894 = vpop.f32.mrf.mxu0
        %895 = vdwg.mxu0
        %v896 = vperm.slane %v324, 1
        %vm897 = vcmp.eq.s32.totalorder %v896, 1
        %v898 = vsel %vm897, %v330, %v424
        %v899 = vsel %vm897, %v335, %v428
        %v900 = vsel %vm897, %v340, %v432
        %v901 = vsel %vm897, %v345, %v436
        %v902 = vsel %vm897, %v350, %v440
        %v903 = vsel %vm897, %v355, %v444
        %v904 = vsel %vm897, %v360, %v448
        %v905 = vsel %vm897, %v365, %v452
        %v906 = vsel %vm897, %v370, %v456
        %v907 = vsel %vm897, %v375, %v460
        %v908 = vsel %vm897, %v380, %v464
        %v909 = vsel %vm897, %v385, %v468
        %v910 = vsel %vm897, %v390, %v472
        %v911 = vsel %vm897, %v395, %v476
        %v912 = vsel %vm897, %v400, %v480
        %v913 = vsel %vm897, %v405, %v484
        %v914 = vsel %vm897, %v410, %v488
        %v915 = vsel %vm897, %v415, %v492
        %v916 = vsel %vm897, %v420, %v496
        %v917 = vmul.f32 %v898, %v848
        %v918 = vmul.f32 %v899, %v850
        %v919 = vmul.f32 %v900, %v853
        %v920 = vmul.f32 %v901, %v855
        %v921 = vmul.f32 %v902, %v858
        %v922 = vmul.f32 %v903, %v860
        %v923 = vmul.f32 %v904, %v863
        %v924 = vmul.f32 %v905, %v865
        %v925 = vmul.f32 %v906, %v868
        %v926 = vmul.f32 %v907, %v870
        %v927 = vmul.f32 %v908, %v873
        %v928 = vmul.f32 %v909, %v875
        %v929 = vmul.f32 %v910, %v878
        %v930 = vmul.f32 %v911, %v880
        %v931 = vmul.f32 %v912, %v883
        %v932 = vmul.f32 %v913, %v885
        %v933 = vmul.f32 %v914, %v888
        %v934 = vmul.f32 %v915, %v890
        %v935 = vmul.f32 %v916, %v893
        %v968 = vunpack.c.l.b16 %v749
        %v969 = vunpack.c.l.b16 %v750
        %v970 = vunpack.c.l.b16 %v751
        %v971 = vunpack.c.l.b16 %v752
        %v972 = vunpack.c.l.b16 %v753
        %v973 = vunpack.c.l.b16 %v754
        %v974 = vunpack.c.l.b16 %v755
        %v975 = vunpack.c.l.b16 %v756
        %v976 = vunpack.c.l.b16 %v757
        %v977 = vunpack.c.l.b16 %v758
        %v978 = vunpack.c.l.b16 %v759
        %v979 = vunpack.c.l.b16 %v760
        %v980 = vunpack.c.l.b16 %v761
        %v981 = vunpack.c.l.b16 %v762
        %v982 = vunpack.c.l.b16 %v763
        %v983 = vunpack.c.l.b16 %v764
        %v984 = vunpack.c.l.b16 %v765
        %v985 = vunpack.c.l.b16 %v766
        %v986 = vunpack.c.l.b16 %v767
        %v987 = vunpack.c.l.b16 %v768
        %v988 = vunpack.c.l.b16 %v769
        %v989 = vunpack.c.l.b16 %v770
        %v990 = vunpack.c.l.b16 %v771
        %v991 = vunpack.c.l.b16 %v772
        %v992 = vunpack.c.l.b16 %v773
        %v993 = vunpack.c.l.b16 %v774
        %v994 = vunpack.c.l.b16 %v775
        %v995 = vunpack.c.l.b16 %v776
        %v996 = vunpack.c.l.b16 %v777
        %v997 = vunpack.c.l.b16 %v778
        %v998 = vunpack.c.l.b16 %v779
        %v999 = vunpack.c.l.b16 %v780
        %v1000 = vpack.c.b16 %v969, %v968
        %v1001 = vpack.c.b16 %v971, %v970
        %v1002 = vpack.c.b16 %v973, %v972
        %v1003 = vpack.c.b16 %v975, %v974
        %v1004 = vpack.c.b16 %v977, %v976
        %v1005 = vpack.c.b16 %v979, %v978
        %v1006 = vpack.c.b16 %v981, %v980
        %v1007 = vpack.c.b16 %v983, %v982
        %v1008 = vpack.c.b16 %v985, %v984
        %v1009 = vpack.c.b16 %v987, %v986
        %v1010 = vpack.c.b16 %v989, %v988
        %v1011 = vpack.c.b16 %v991, %v990
        %v1012 = vpack.c.b16 %v993, %v992
        %v1013 = vpack.c.b16 %v995, %v994
        %v1014 = vpack.c.b16 %v997, %v996
        %v1015 = vpack.c.b16 %v999, %v998
        %1032 = vmatpush.bf16.msra.mxu0 %v1007
        %1033 = vmatpush.bf16.msra.mxu0 %v1006
        %1034 = vmatpush.bf16.msra.mxu0 %v1005
        %1035 = vmatpush.bf16.msra.mxu0 %v1004
        %1036 = vmatpush.bf16.msra.mxu0 %v1003
        %1037 = vmatpush.bf16.msra.mxu0 %v1002
        %1038 = vmatpush.bf16.msra.mxu0 %v1001
        %1039 = vmatpush.bf16.msra.mxu0 %v1000
        %1040 = vmatmul.bf16.gmra.mxu0 %v729
        %v1041 = vpop.f32.mrf.mxu0
        %v1042 = vadd.f32 %v917, %v1041
        %v1043 = vpop.f32.mrf.mxu0
        %v1044 = vadd.f32 %v918, %v1043
        %1045 = vmatmul.bf16.gmra.mxu0 %v731
        %v1046 = vpop.f32.mrf.mxu0
        %v1047 = vadd.f32 %v919, %v1046
        %v1048 = vpop.f32.mrf.mxu0
        %v1049 = vadd.f32 %v920, %v1048
        %1050 = vmatmul.bf16.gmra.mxu0 %v733
        %v1051 = vpop.f32.mrf.mxu0
        %v1052 = vadd.f32 %v921, %v1051
        %v1053 = vpop.f32.mrf.mxu0
        %v1054 = vadd.f32 %v922, %v1053
        %1055 = vmatmul.bf16.gmra.mxu0 %v735
        %v1056 = vpop.f32.mrf.mxu0
        %v1057 = vadd.f32 %v923, %v1056
        %v1058 = vpop.f32.mrf.mxu0
        %v1059 = vadd.f32 %v924, %v1058
        %1060 = vmatmul.bf16.gmra.mxu0 %v737
        %v1061 = vpop.f32.mrf.mxu0
        %v1062 = vadd.f32 %v925, %v1061
        %v1063 = vpop.f32.mrf.mxu0
        %v1064 = vadd.f32 %v926, %v1063
        %1065 = vmatmul.bf16.gmra.mxu0 %v739
        %v1066 = vpop.f32.mrf.mxu0
        %v1067 = vadd.f32 %v927, %v1066
        %v1068 = vpop.f32.mrf.mxu0
        %v1069 = vadd.f32 %v928, %v1068
        %1070 = vmatmul.bf16.gmra.mxu0 %v741
        %v1071 = vpop.f32.mrf.mxu0
        %v1072 = vadd.f32 %v929, %v1071
        %v1073 = vpop.f32.mrf.mxu0
        %v1074 = vadd.f32 %v930, %v1073
        %1075 = vmatmul.bf16.gmra.mxu0 %v743
        %v1076 = vpop.f32.mrf.mxu0
        %v1077 = vadd.f32 %v931, %v1076
        %v1078 = vpop.f32.mrf.mxu0
        %v1079 = vadd.f32 %v932, %v1078
        %1080 = vmatmul.bf16.gmra.mxu0 %v745
        %v1081 = vpop.f32.mrf.mxu0
        %v1082 = vadd.f32 %v933, %v1081
        %v1083 = vpop.f32.mrf.mxu0
        %v1084 = vadd.f32 %v934, %v1083
        %1085 = vmatmul.bf16.gmra.mxu0 %v747
        %v1086 = vpop.f32.mrf.mxu0
        %v1087 = vadd.f32 %v935, %v1086
        %v1088 = vpop.f32.mrf.mxu0
        %1089 = vdwg.mxu0
        %1090 = vmatpush.bf16.msra.mxu0 %v1015
        %1091 = vmatpush.bf16.msra.mxu0 %v1014
        %1092 = vmatpush.bf16.msra.mxu0 %v1013
        %1093 = vmatpush.bf16.msra.mxu0 %v1012
        %1094 = vmatpush.bf16.msra.mxu0 %v1011
        %1095 = vmatpush.bf16.msra.mxu0 %v1010
        %1096 = vmatpush.bf16.msra.mxu0 %v1009
        %1097 = vmatpush.bf16.msra.mxu0 %v1008
        %1098 = vmatmul.bf16.gmra.mxu0 %v730
        %v1099 = vpop.f32.mrf.mxu0
        %v1100 = vadd.f32 %v1042, %v1099
        %v1101 = vpop.f32.mrf.mxu0
        %v1102 = vadd.f32 %v1044, %v1101
        %1103 = vmatmul.bf16.gmra.mxu0 %v732
        %v1104 = vpop.f32.mrf.mxu0
        %v1105 = vadd.f32 %v1047, %v1104
        %v1106 = vpop.f32.mrf.mxu0
        %v1107 = vadd.f32 %v1049, %v1106
        %1108 = vmatmul.bf16.gmra.mxu0 %v734
        %v1109 = vpop.f32.mrf.mxu0
        %v1110 = vadd.f32 %v1052, %v1109
        %v1111 = vpop.f32.mrf.mxu0
        %v1112 = vadd.f32 %v1054, %v1111
        %1113 = vmatmul.bf16.gmra.mxu0 %v736
        %v1114 = vpop.f32.mrf.mxu0
        %v1115 = vadd.f32 %v1057, %v1114
        %v1116 = vpop.f32.mrf.mxu0
        %v1117 = vadd.f32 %v1059, %v1116
        %1118 = vmatmul.bf16.gmra.mxu0 %v738
        %v1119 = vpop.f32.mrf.mxu0
        %v1120 = vadd.f32 %v1062, %v1119
        %v1121 = vpop.f32.mrf.mxu0
        %v1122 = vadd.f32 %v1064, %v1121
        %1123 = vmatmul.bf16.gmra.mxu0 %v740
        %v1124 = vpop.f32.mrf.mxu0
        %v1125 = vadd.f32 %v1067, %v1124
        %v1126 = vpop.f32.mrf.mxu0
        %v1127 = vadd.f32 %v1069, %v1126
        %1128 = vmatmul.bf16.gmra.mxu0 %v742
        %v1129 = vpop.f32.mrf.mxu0
        %v1130 = vadd.f32 %v1072, %v1129
        %v1131 = vpop.f32.mrf.mxu0
        %v1132 = vadd.f32 %v1074, %v1131
        %1133 = vmatmul.bf16.gmra.mxu0 %v744
        %v1134 = vpop.f32.mrf.mxu0
        %v1135 = vadd.f32 %v1077, %v1134
        %v1136 = vpop.f32.mrf.mxu0
        %v1137 = vadd.f32 %v1079, %v1136
        %1138 = vmatmul.bf16.gmra.mxu0 %v746
        %v1139 = vpop.f32.mrf.mxu0
        %v1140 = vadd.f32 %v1082, %v1139
        %v1141 = vpop.f32.mrf.mxu0
        %v1142 = vadd.f32 %v1084, %v1141
        %1143 = vmatmul.bf16.gmra.mxu0 %v748
        %v1144 = vpop.f32.mrf.mxu0
        %v1145 = vadd.f32 %v1087, %v1144
        %v1146 = vpop.f32.mrf.mxu0
        %1147 = vdwg.mxu0
        %1148 = vst [vmem:[%s268] sm:$0xff] %v1100
        %1149 = vst [vmem:[%s268 + $0x8] sm:$0xff] %v1102
        %1150 = vst [vmem:[%s268 + $0x10] sm:$0xff] %v1105
        %1151 = vst [vmem:[%s268 + $0x18] sm:$0xff] %v1107
        %1152 = vst [vmem:[%s268 + $0x20] sm:$0xff] %v1110
        %1153 = vst [vmem:[%s268 + $0x28] sm:$0xff] %v1112
        %1154 = vst [vmem:[%s268 + $0x30] sm:$0xff] %v1115
        %1155 = vst [vmem:[%s268 + $0x38] sm:$0xff] %v1117
        %1156 = vst [vmem:[%s268 + $0x40] sm:$0xff] %v1120
        %1157 = vst [vmem:[%s268 + $0x48] sm:$0xff] %v1122
        %1158 = vst [vmem:[%s268 + $0x50] sm:$0xff] %v1125
        %1159 = vst [vmem:[%s268 + $0x58] sm:$0xff] %v1127
        %1160 = vst [vmem:[%s268 + $0x60] sm:$0xff] %v1130
        %1161 = vst [vmem:[%s268 + $0x68] sm:$0xff] %v1132
        %1162 = vst [vmem:[%s268 + $0x70] sm:$0xff] %v1135
        %1163 = vst [vmem:[%s268 + $0x78] sm:$0xff] %v1137
        %1164 = vst [vmem:[%s268 + $0x80] sm:$0xff] %v1140
        %1165 = vst [vmem:[%s268 + $0x88] sm:$0xff] %v1142
        %1166 = vst [vmem:[%s268 + $0x90] sm:$0xff] %v1145
        %s1167 = sand.u32 %s144, 1
        %s1168 = scalar_lea.sflag [#allocation4], %s1167
        %s1169 = sand.u32 %s144, 1
        %s1170 = smul.addr %s1169, 152
        %s1171 = scalar_lea.vmem [#allocation7], %s1170
        // Predicated region
        $region49: #{tpu_custom_call.1} parent=39 // pred_check
          %p1172 = pneg %p154
        $region50: #{tpu_custom_call.1} parent=39 // pred_check_branch
          %1174 = sbr.rel (%p1172) target = $region52
        $region51: #{tpu_custom_call.1} parent=39 // pred_region
          %s1175 = smul.u32 19, %s21
          %1177 = vsyncadd %s1168, 0
          %s1178 = smul.addr %s1175, 8
          %s1179 = scalar_lea.hbm %s5, %s1178
          %s1180 = sshll.u32 %s1171, 4
          %s1181 = int_to_ptr.vmem [resolvable:$true] %s1180
          %s1182 = sshll.u32 %s1179, 4
          %s1183 = int_to_ptr.hbm [resolvable:$true] %s1182
          %1188 = dma.vmem_to_hbm [thread:$0]  %s1181, 2432, %s1183, %s1168, 128, 128, 8
        $region52: #{tpu_custom_call.1} parent=39 // pred_fallthru
          _
      $region40: #{tpu_custom_call.1} parent=5 // pred_fallthru
        _
      %p1189 = scmp.le.s32.totalorder 2, %s16
      // Predicated region
      $region53: #{tpu_custom_call.1} parent=5 // pred_check
        %p1190 = pneg %p1189
      $region54: #{tpu_custom_call.1} parent=5 // pred_check_branch
        %1192 = sbr.rel (%p1190) target = $region56
      $region55: #{tpu_custom_call.1} parent=5 // pred_region
        %s1193 = ssub.s32 %s16, 2
        // Predicated region
        $region57: #{tpu_custom_call.1} parent=55 // pred_check
          %p1194 = pneg %p160
        $region58: #{tpu_custom_call.1} parent=55 // pred_check_branch
          %1196 = sbr.rel (%p1194) target = $region60
        $region59: #{tpu_custom_call.1} parent=55 // pred_region
          %s1197 = sand.u32 %s145, 1
          %s1198 = scalar_lea.sflag [#allocation4], %s1197
          %s1199 = sand.u32 %s145, 1
          %s1200 = smul.addr %s1199, 152
          %s1201 = scalar_lea.vmem [#allocation7], %s1200
          %1203 = dma.done %s1198, 2432
        $region60: #{tpu_custom_call.1} parent=55 // pred_fallthru
          _
      $region56: #{tpu_custom_call.1} parent=5 // pred_fallthru
        _
    $region6: #{tpu_custom_call.1} parent=1 // loop_footer
      %s20 = sadd.s32 1, %s16
    $region7: #{tpu_custom_call.1} parent=1 // loop_footer_branch
      %15 = sbr.rel target = $region3
    $region8: #{tpu_custom_call.1} parent=1 // loop_exit
      _
    %1204 = vsyncpa [#allocation3], 1
    %s1205 = scalar_lea.sflag [#allocation3], 1
    %1206 = vsyncpa %s1205, 1
    %1207 = vsyncpa [#allocation6], 1
    %1208 = vsyncpa [#allocation4], 1
    %s1209 = scalar_lea.sflag [#allocation4], 1
    %1210 = vsyncpa %s1209, 1

</llo_original>
